<compile_context>
chip_gen: v7x
topology: tpu7x:2x2x1
jax: 0.10.0
libtpu: 0.0.40
codegen_flags: <defaults>
</compile_context>

<pallas_src>
import functools

import jax
import jax.numpy as jnp
from jax import lax
from jax.experimental import pallas as pl
from jax.experimental.pallas import tpu as pltpu
import numpy as np


def _shaped_attention_kernel(gains_ref, x_ref, w_ref, b_ref, out_ref, qk_ref):
    """One (batch, query-tile) program of SimplifiedAttention.

    gains_ref : SMEM (3, H)     [attn_mat_resid_gain, attn_mat_skip_gain, centre_attn_gain]
    x_ref     : VMEM (1, S, E)  hidden states for this batch element (also the value)
    w_ref     : VMEM (E, 2E)    qk_attn weight (query half | key half)
    b_ref     : VMEM (1, 2E)    qk_attn bias
    out_ref   : VMEM (1, TQ, E) output rows for this query tile, all heads merged
    qk_ref    : VMEM (S, 2E)    scratch: full Q|K projection for this batch element
    """
    S = x_ref.shape[1]
    E = x_ref.shape[2]
    H = gains_ref.shape[1]
    Dh = E // H
    TQ = out_ref.shape[1]

    qi = pl.program_id(1)

    # --- full-width QK projection, computed once per batch element (qi == 0) ---
    @pl.when(qi == 0)
    def _():
        x = x_ref[0]                                                    # (S, E)
        qk = jnp.dot(x, w_ref[...], preferred_element_type=jnp.float32)  # (S, 2E)
        qk_ref[...] = (qk + b_ref[...].astype(jnp.float32)).astype(qk_ref.dtype)

    q_start = pl.multiple_of(qi * TQ, TQ)

    # Per-tile masks (hoisted out of the head loop).
    row = q_start + lax.broadcasted_iota(jnp.int32, (TQ, S), 0)          # global query row
    col = lax.broadcasted_iota(jnp.int32, (TQ, S), 1)                    # key column
    causal = col <= row
    diag = col == row
    # centre-attention uniform term: 1 / (row + 1), per query row only (TQ, 1).
    inv_cnt = pl.reciprocal((row[:, :1] + 1).astype(jnp.float32), approx=False)

    mask_value = jnp.finfo(jnp.float32).min

    outs = []
    for h in range(H):                                # heads: static, small trip count
        resid_g = gains_ref[0, h]
        skip_g = gains_ref[1, h]
        centre_g = gains_ref[2, h]

        q_h = qk_ref[pl.ds(q_start, TQ), pl.ds(h * Dh, Dh)]              # (TQ, Dh)
        k_h = qk_ref[:, pl.ds(E + h * Dh, Dh)]                           # (S, Dh)

        # Scores: contract the last dims directly (no k.T materialization).
        s = lax.dot_general(q_h, k_h, (((1,), (1,)), ((), ())),
                            preferred_element_type=jnp.float32)          # (TQ, S)
        s = jnp.where(causal, s, mask_value)

        # Row softmax (no 1/sqrt(d): scale_attn_weights=False).
        m = jnp.max(s, axis=-1, keepdims=True)
        e = jnp.exp(s - m)
        l = jnp.sum(e, axis=-1, keepdims=True)
        p = e * pl.reciprocal(l, approx=False)                           # (TQ, S)

        # Shaped-attention epilogue, fused:
        #   resid_g * P + skip_g * I - centre_g * UniformCausal
        new_p = (jnp.where(causal, resid_g * p - centre_g * inv_cnt, 0.0)
                 + jnp.where(diag, skip_g, 0.0))                         # (TQ, S)

        # Value is the identity of hidden_states (v_attn = Identity): slice x.
        v_h = x_ref[0, :, pl.ds(h * Dh, Dh)]                             # (S, Dh)
        o_h = jnp.dot(new_p.astype(v_h.dtype), v_h,
                      preferred_element_type=jnp.float32)                # (TQ, Dh)
        outs.append(o_h)

    # Merge heads in-kernel and store one lane-dense (TQ, E) block.
    out_ref[0] = jnp.concatenate(outs, axis=-1).astype(out_ref.dtype)


@functools.partial(jax.jit, static_argnames=("num_heads", "q_tile"))
def simplified_attention(x, w_qk, b_qk, resid_gain, skip_gain, centre_gain,
                         *, num_heads, q_tile=256):
    """Forward pass of SimplifiedAttention (module defaults; returns proj_output only)."""
    B, S, E = x.shape
    H = num_heads
    Dh = E // H
    assert H * Dh == E

    # Query tile: full sequence if it fits the tile budget, otherwise q_tile
    # (must divide S; fall back to a single tile otherwise).
    if S <= q_tile or (S % q_tile) != 0:
        TQ = S
    else:
        TQ = q_tile
    NQ = S // TQ

    gains = jnp.stack([resid_gain, skip_gain, centre_gain]).astype(jnp.float32)  # (3, H)
    b2 = b_qk.reshape(1, 2 * E).astype(x.dtype)
    w = w_qk.astype(x.dtype)

    # VMEM budget estimate (double-buffered inputs/outputs + projection scratch),
    # clamped to stay within v7x's 64 MiB physical VMEM.
    bpe = jnp.dtype(x.dtype).itemsize
    est = (2 * (S * E * bpe + E * 2 * E * bpe + 2 * E * bpe + TQ * E * bpe)
           + S * 2 * E * bpe + (8 << 20))
    vmem_limit = int(min(max(est, 32 << 20), 64 << 20))

    out = pl.pallas_call(
        _shaped_attention_kernel,
        out_shape=jax.ShapeDtypeStruct((B, S, E), x.dtype),
        grid=(B, NQ),
        in_specs=[
            pl.BlockSpec(memory_space=pltpu.MemorySpace.SMEM),        # gains (3, H)
            pl.BlockSpec((1, S, E), lambda b, qi: (b, 0, 0)),         # x (resident per batch)
            pl.BlockSpec((E, 2 * E), lambda b, qi: (0, 0)),           # w_qk (resident)
            pl.BlockSpec((1, 2 * E), lambda b, qi: (0, 0)),           # b_qk (resident)
        ],
        out_specs=pl.BlockSpec((1, TQ, E), lambda b, qi: (b, qi, 0)),  # lane-dense (B,S,E)
        scratch_shapes=[pltpu.VMEM((S, 2 * E), x.dtype)],              # Q|K projection
        compiler_params=pltpu.CompilerParams(
            dimension_semantics=("parallel", "arbitrary"),
            vmem_limit_bytes=vmem_limit),
    )(gains, x, w, b2)

    # c_proj is Identity and resid_dropout is identity in eval mode.
    return out


def _reference_forward(x, w_qk, b_qk, resid_gain, skip_gain, centre_gain, num_heads):
    """Pure-JAX transliteration of the PyTorch forward (for correctness check)."""
    B, S, E = x.shape
    H = num_heads
    Dh = E // H
    qk = x @ w_qk + b_qk
    q, k = qk[..., :E], qk[..., E:]

    def split(t):
        return t.reshape(B, S, H, Dh).transpose(0, 2, 1, 3)

    q, k, v = split(q), split(k), split(x)
    scores = jnp.einsum("bhqd,bhkd->bhqk", q, k)
    row = jnp.arange(S)[:, None]
    col = jnp.arange(S)[None, :]
    causal = col <= row
    scores = jnp.where(causal, scores, jnp.finfo(scores.dtype).min)
    attn = jax.nn.softmax(scores, axis=-1)
    diag = jnp.eye(S, dtype=x.dtype)
    uniform = jnp.where(causal, 1.0 / (row + 1).astype(x.dtype), 0.0)
    g = lambda v_: v_[None, :, None, None]
    new_attn = g(resid_gain) * attn + g(skip_gain) * diag - g(centre_gain) * uniform
    out = jnp.einsum("bhqk,bhkd->bhqd", new_attn, v)
    return out.transpose(0, 2, 1, 3).reshape(B, S, E)


if __name__ == "__main__":
    # Small shapes consistent with the module: (B, S, E) with E = H * Dh.
    B, S, E, H = 2, 8, 32, 4

    key = jax.random.PRNGKey(0)
    kx, kq, kk = jax.random.split(key, 3)

    x = jax.random.normal(kx, (B, S, E), dtype=jnp.float32)

    # qk_attn: SimplifiedConv1D(2E, E) -> weight (E, 2E), bias (2E,).
    # (Module default zeroes the query half via query_init_std=0; we use a small
    #  deterministic normal init for both halves so the score matmul is exercised.)
    wq_part = 0.02 * jax.random.normal(kq, (E, E), dtype=jnp.float32)
    wk_part = 0.02 * jax.random.normal(kk, (E, E), dtype=jnp.float32)
    w_qk = jnp.concatenate([wq_part, wk_part], axis=1)          # (E, 2E)
    b_qk = jnp.zeros((2 * E,), dtype=jnp.float32)

    # Per-head gains (module defaults are ones; distinct values exercise indexing).
    attn_mat_resid_gain = 1.0 + 0.1 * jnp.arange(H, dtype=jnp.float32)
    attn_mat_skip_gain = 1.0 - 0.05 * jnp.arange(H, dtype=jnp.float32)
    centre_attn_gain = 1.0 + 0.02 * jnp.arange(H, dtype=jnp.float32)

    out = simplified_attention(x, w_qk, b_qk, attn_mat_resid_gain,
                               attn_mat_skip_gain, centre_attn_gain,
                               num_heads=H)
    out = jax.block_until_ready(out)

    ref = _reference_forward(x, w_qk, b_qk, attn_mat_resid_gain,
                             attn_mat_skip_gain, centre_attn_gain, H)
    np.testing.assert_allclose(np.asarray(out), np.asarray(ref),
                               rtol=1e-5, atol=1e-5)
    print("KERNEL_OK")
</pallas_src>

<mosaic_0001>
module attributes {stable_mosaic.version = 11 : i64} {
  func.func @_shaped_attention_kernel(%arg0: i32, %arg1: i32, %arg2: memref<3x4xf32, #tpu.memory_space<smem>>, %arg3: memref<1x8x32xf32, #tpu.memory_space<vmem>>, %arg4: memref<32x64xf32, #tpu.memory_space<vmem>>, %arg5: memref<1x64xf32, #tpu.memory_space<vmem>>, %arg6: memref<1x8x32xf32, #tpu.memory_space<vmem>>, %arg7: memref<8x64xf32, #tpu.memory_space<vmem>>) attributes {dimension_semantics = [#tpu.dimension_semantics<parallel>, #tpu.dimension_semantics<arbitrary>], iteration_bounds = array<i64: 2, 1>, scalar_prefetch = 0 : i64, scratch_operands = 1 : i64, tpu.core_type = #tpu.core_type<tc>, window_params = [{transform_indices = @transform_0, window_bounds = array<i64: 3, 4>}, {transform_indices = @transform_1, window_bounds = array<i64: 1, 8, 32>}, {pipeline_mode = #tpu.pipeline_mode<synchronous>, transform_indices = @transform_2, window_bounds = array<i64: 32, 64>}, {pipeline_mode = #tpu.pipeline_mode<synchronous>, transform_indices = @transform_3, window_bounds = array<i64: 1, 64>}, {transform_indices = @transform_4, window_bounds = array<i64: 1, 8, 32>}]} {
    %c0_i32 = arith.constant 0 : i32
    %0 = arith.cmpi eq, %arg1, %c0_i32 : i32
    %1 = arith.extui %0 : i1 to i32
    %c0_i32_0 = arith.constant 0 : i32
    %2 = arith.cmpi ne, %1, %c0_i32_0 : i32
    scf.if %2 {
      %c0_68 = arith.constant 0 : index
      %c0_69 = arith.constant 0 : index
      %c0_70 = arith.constant 0 : index
      %156 = vector.load %arg3[%c0_68, %c0_69, %c0_70] : memref<1x8x32xf32, #tpu.memory_space<vmem>>, vector<1x8x32xf32>
      %157 = vector.shape_cast %156 : vector<1x8x32xf32> to vector<8x32xf32>
      %c0_71 = arith.constant 0 : index
      %c0_72 = arith.constant 0 : index
      %158 = vector.load %arg4[%c0_71, %c0_72] : memref<32x64xf32, #tpu.memory_space<vmem>>, vector<32x64xf32>
      %cst_73 = arith.constant dense<0.000000e+00> : vector<8x64xf32>
      %159 = tpu.matmul %157, %158, %cst_73 {dimension_numbers = #tpu.dot_dimension_numbers<[1], [0], [0], [1], [0, 0, 1, 1], [], []>} : vector<8x32xf32>, vector<32x64xf32>, vector<8x64xf32> -> vector<8x64xf32>
      %c0_74 = arith.constant 0 : index
      %c0_75 = arith.constant 0 : index
      %160 = vector.load %arg5[%c0_74, %c0_75] : memref<1x64xf32, #tpu.memory_space<vmem>>, vector<1x64xf32>
      %161 = vector.broadcast %160 : vector<1x64xf32> to vector<8x64xf32>
      %162 = arith.addf %159, %161 : vector<8x64xf32>
      %c0_76 = arith.constant 0 : index
      %c0_77 = arith.constant 0 : index
      %163 = vector.load %arg7[%c0_76, %c0_77] : memref<8x64xf32, #tpu.memory_space<vmem>>, vector<8x64xf32>
      tpu.vector_store %arg7[%c0_76, %c0_77], %162 {strides = array<i32>} : memref<8x64xf32, #tpu.memory_space<vmem>>, vector<8x64xf32>,
    } else {
    }
    %c8_i32 = arith.constant 8 : i32
    %3 = arith.muli %arg1, %c8_i32 : i32
    %4 = tpu.assume_multiple %3, 8 : i32
    %5 = tpu.iota {dimensions = array<i32: 0>} : vector<8x8xi32>
    %6 = vector.broadcast %4 : i32 to vector<8x8xi32>
    %7 = arith.addi %6, %5 : vector<8x8xi32>
    %8 = tpu.iota {dimensions = array<i32: 1>} : vector<8x8xi32>
    %9 = arith.cmpi sle, %8, %7 : vector<8x8xi32>
    %10 = arith.cmpi eq, %8, %7 : vector<8x8xi32>
    %11 = vector.extract_strided_slice %7 {offsets = [0, 0], sizes = [8, 1], strides = [1, 1]} : vector<8x8xi32> to vector<8x1xi32>
    %c1_i32 = arith.constant 1 : i32
    %12 = vector.broadcast %c1_i32 : i32 to vector<8x1xi32>
    %13 = arith.addi %11, %12 : vector<8x1xi32>
    %14 = arith.sitofp %13 : vector<8x1xi32> to vector<8x1xf32>
    %15 = tpu.reciprocal %14 : vector<8x1xf32> -> vector<8x1xf32>
    %c0 = arith.constant 0 : index
    %c0_1 = arith.constant 0 : index
    %16 = memref.load %arg2[%c0, %c0_1] : memref<3x4xf32, #tpu.memory_space<smem>>
    %c1 = arith.constant 1 : index
    %c0_2 = arith.constant 0 : index
    %17 = memref.load %arg2[%c1, %c0_2] : memref<3x4xf32, #tpu.memory_space<smem>>
    %c2 = arith.constant 2 : index
    %c0_3 = arith.constant 0 : index
    %18 = memref.load %arg2[%c2, %c0_3] : memref<3x4xf32, #tpu.memory_space<smem>>
    %19 = arith.index_cast %4 : i32 to index
    %c0_4 = arith.constant 0 : index
    %20 = vector.load %arg7[%19, %c0_4] : memref<8x64xf32, #tpu.memory_space<vmem>>, vector<8x8xf32>
    %c0_5 = arith.constant 0 : index
    %c32 = arith.constant 32 : index
    %21 = vector.load %arg7[%c0_5, %c32] : memref<8x64xf32, #tpu.memory_space<vmem>>, vector<8x8xf32>
    %cst = arith.constant dense<0.000000e+00> : vector<8x8xf32>
    %22 = tpu.matmul %20, %21, %cst {dimension_numbers = #tpu.dot_dimension_numbers<[1], [1], [0], [0], [0, 0, 1, 0], [], []>} : vector<8x8xf32>, vector<8x8xf32>, vector<8x8xf32> -> vector<8x8xf32>
    %cst_6 = arith.constant -3.40282347E+38 : f32
    %23 = vector.broadcast %cst_6 : f32 to vector<8x8xf32>
    %24 = arith.select %9, %22, %23 : vector<8x8xi1>, vector<8x8xf32>
    %cst_7 = arith.constant dense<0xFF800000> : vector<8xf32>
    %25 = vector.multi_reduction <maximumf>, %24, %cst_7 [1] : vector<8x8xf32> to vector<8xf32>
    %26 = vector.shape_cast %25 : vector<8xf32> to vector<8x1xf32>
    %27 = vector.broadcast %26 : vector<8x1xf32> to vector<8x8xf32>
    %28 = arith.subf %24, %27 : vector<8x8xf32>
    %29 = math.exp %28 : vector<8x8xf32>
    %cst_8 = arith.constant dense<0.000000e+00> : vector<8xf32>
    %30 = vector.multi_reduction <add>, %29, %cst_8 [1] : vector<8x8xf32> to vector<8xf32>
    %31 = vector.shape_cast %30 : vector<8xf32> to vector<8x1xf32>
    %32 = tpu.reciprocal %31 : vector<8x1xf32> -> vector<8x1xf32>
    %33 = vector.broadcast %32 : vector<8x1xf32> to vector<8x8xf32>
    %34 = arith.mulf %29, %33 : vector<8x8xf32>
    %35 = vector.broadcast %16 : f32 to vector<8x8xf32>
    %36 = arith.mulf %35, %34 : vector<8x8xf32>
    %37 = vector.broadcast %18 : f32 to vector<8x1xf32>
    %38 = arith.mulf %37, %15 : vector<8x1xf32>
    %39 = vector.broadcast %38 : vector<8x1xf32> to vector<8x8xf32>
    %40 = arith.subf %36, %39 : vector<8x8xf32>
    %cst_9 = arith.constant 0.000000e+00 : f32
    %41 = vector.broadcast %cst_9 : f32 to vector<8x8xf32>
    %42 = arith.select %9, %40, %41 : vector<8x8xi1>, vector<8x8xf32>
    %cst_10 = arith.constant 0.000000e+00 : f32
    %43 = vector.broadcast %17 : f32 to vector<8x8xf32>
    %44 = vector.broadcast %cst_10 : f32 to vector<8x8xf32>
    %45 = arith.select %10, %43, %44 : vector<8x8xi1>, vector<8x8xf32>
    %46 = arith.addf %42, %45 : vector<8x8xf32>
    %c0_11 = arith.constant 0 : index
    %c0_12 = arith.constant 0 : index
    %c0_13 = arith.constant 0 : index
    %47 = vector.load %arg3[%c0_11, %c0_12, %c0_13] : memref<1x8x32xf32, #tpu.memory_space<vmem>>, vector<1x8x8xf32>
    %48 = vector.shape_cast %47 : vector<1x8x8xf32> to vector<8x8xf32>
    %cst_14 = arith.constant dense<0.000000e+00> : vector<8x8xf32>
    %49 = tpu.matmul %46, %48, %cst_14 {dimension_numbers = #tpu.dot_dimension_numbers<[1], [0], [0], [1], [0, 0, 1, 1], [], []>} : vector<8x8xf32>, vector<8x8xf32>, vector<8x8xf32> -> vector<8x8xf32>
    %c0_15 = arith.constant 0 : index
    %c1_16 = arith.constant 1 : index
    %50 = memref.load %arg2[%c0_15, %c1_16] : memref<3x4xf32, #tpu.memory_space<smem>>
    %c1_17 = arith.constant 1 : index
    %c1_18 = arith.constant 1 : index
    %51 = memref.load %arg2[%c1_17, %c1_18] : memref<3x4xf32, #tpu.memory_space<smem>>
    %c2_19 = arith.constant 2 : index
    %c1_20 = arith.constant 1 : index
    %52 = memref.load %arg2[%c2_19, %c1_20] : memref<3x4xf32, #tpu.memory_space<smem>>
    %53 = arith.index_cast %4 : i32 to index
    %c8 = arith.constant 8 : index
    %54 = vector.load %arg7[%53, %c8] : memref<8x64xf32, #tpu.memory_space<vmem>>, vector<8x8xf32>
    %c0_21 = arith.constant 0 : index
    %c40 = arith.constant 40 : index
    %55 = vector.load %arg7[%c0_21, %c40] : memref<8x64xf32, #tpu.memory_space<vmem>>, vector<8x8xf32>
    %cst_22 = arith.constant dense<0.000000e+00> : vector<8x8xf32>
    %56 = tpu.matmul %54, %55, %cst_22 {dimension_numbers = #tpu.dot_dimension_numbers<[1], [1], [0], [0], [0, 0, 1, 0], [], []>} : vector<8x8xf32>, vector<8x8xf32>, vector<8x8xf32> -> vector<8x8xf32>
    %cst_23 = arith.constant -3.40282347E+38 : f32
    %57 = vector.broadcast %cst_23 : f32 to vector<8x8xf32>
    %58 = arith.select %9, %56, %57 : vector<8x8xi1>, vector<8x8xf32>
    %cst_24 = arith.constant dense<0xFF800000> : vector<8xf32>
    %59 = vector.multi_reduction <maximumf>, %58, %cst_24 [1] : vector<8x8xf32> to vector<8xf32>
    %60 = vector.shape_cast %59 : vector<8xf32> to vector<8x1xf32>
    %61 = vector.broadcast %60 : vector<8x1xf32> to vector<8x8xf32>
    %62 = arith.subf %58, %61 : vector<8x8xf32>
    %63 = math.exp %62 : vector<8x8xf32>
    %cst_25 = arith.constant dense<0.000000e+00> : vector<8xf32>
    %64 = vector.multi_reduction <add>, %63, %cst_25 [1] : vector<8x8xf32> to vector<8xf32>
    %65 = vector.shape_cast %64 : vector<8xf32> to vector<8x1xf32>
    %66 = tpu.reciprocal %65 : vector<8x1xf32> -> vector<8x1xf32>
    %67 = vector.broadcast %66 : vector<8x1xf32> to vector<8x8xf32>
    %68 = arith.mulf %63, %67 : vector<8x8xf32>
    %69 = vector.broadcast %50 : f32 to vector<8x8xf32>
    %70 = arith.mulf %69, %68 : vector<8x8xf32>
    %71 = vector.broadcast %52 : f32 to vector<8x1xf32>
    %72 = arith.mulf %71, %15 : vector<8x1xf32>
    %73 = vector.broadcast %72 : vector<8x1xf32> to vector<8x8xf32>
    %74 = arith.subf %70, %73 : vector<8x8xf32>
    %cst_26 = arith.constant 0.000000e+00 : f32
    %75 = vector.broadcast %cst_26 : f32 to vector<8x8xf32>
    %76 = arith.select %9, %74, %75 : vector<8x8xi1>, vector<8x8xf32>
    %cst_27 = arith.constant 0.000000e+00 : f32
    %77 = vector.broadcast %51 : f32 to vector<8x8xf32>
    %78 = vector.broadcast %cst_27 : f32 to vector<8x8xf32>
    %79 = arith.select %10, %77, %78 : vector<8x8xi1>, vector<8x8xf32>
    %80 = arith.addf %76, %79 : vector<8x8xf32>
    %c0_28 = arith.constant 0 : index
    %c0_29 = arith.constant 0 : index
    %c8_30 = arith.constant 8 : index
    %81 = vector.load %arg3[%c0_28, %c0_29, %c8_30] : memref<1x8x32xf32, #tpu.memory_space<vmem>>, vector<1x8x8xf32>
    %82 = vector.shape_cast %81 : vector<1x8x8xf32> to vector<8x8xf32>
    %cst_31 = arith.constant dense<0.000000e+00> : vector<8x8xf32>
    %83 = tpu.matmul %80, %82, %cst_31 {dimension_numbers = #tpu.dot_dimension_numbers<[1], [0], [0], [1], [0, 0, 1, 1], [], []>} : vector<8x8xf32>, vector<8x8xf32>, vector<8x8xf32> -> vector<8x8xf32>
    %c0_32 = arith.constant 0 : index
    %c2_33 = arith.constant 2 : index
    %84 = memref.load %arg2[%c0_32, %c2_33] : memref<3x4xf32, #tpu.memory_space<smem>>
    %c1_34 = arith.constant 1 : index
    %c2_35 = arith.constant 2 : index
    %85 = memref.load %arg2[%c1_34, %c2_35] : memref<3x4xf32, #tpu.memory_space<smem>>
    %c2_36 = arith.constant 2 : index
    %c2_37 = arith.constant 2 : index
    %86 = memref.load %arg2[%c2_36, %c2_37] : memref<3x4xf32, #tpu.memory_space<smem>>
    %87 = arith.index_cast %4 : i32 to index
    %c16 = arith.constant 16 : index
    %88 = vector.load %arg7[%87, %c16] : memref<8x64xf32, #tpu.memory_space<vmem>>, vector<8x8xf32>
    %c0_38 = arith.constant 0 : index
    %c48 = arith.constant 48 : index
    %89 = vector.load %arg7[%c0_38, %c48] : memref<8x64xf32, #tpu.memory_space<vmem>>, vector<8x8xf32>
    %cst_39 = arith.constant dense<0.000000e+00> : vector<8x8xf32>
    %90 = tpu.matmul %88, %89, %cst_39 {dimension_numbers = #tpu.dot_dimension_numbers<[1], [1], [0], [0], [0, 0, 1, 0], [], []>} : vector<8x8xf32>, vector<8x8xf32>, vector<8x8xf32> -> vector<8x8xf32>
    %cst_40 = arith.constant -3.40282347E+38 : f32
    %91 = vector.broadcast %cst_40 : f32 to vector<8x8xf32>
    %92 = arith.select %9, %90, %91 : vector<8x8xi1>, vector<8x8xf32>
    %cst_41 = arith.constant dense<0xFF800000> : vector<8xf32>
    %93 = vector.multi_reduction <maximumf>, %92, %cst_41 [1] : vector<8x8xf32> to vector<8xf32>
    %94 = vector.shape_cast %93 : vector<8xf32> to vector<8x1xf32>
    %95 = vector.broadcast %94 : vector<8x1xf32> to vector<8x8xf32>
    %96 = arith.subf %92, %95 : vector<8x8xf32>
    %97 = math.exp %96 : vector<8x8xf32>
    %cst_42 = arith.constant dense<0.000000e+00> : vector<8xf32>
    %98 = vector.multi_reduction <add>, %97, %cst_42 [1] : vector<8x8xf32> to vector<8xf32>
    %99 = vector.shape_cast %98 : vector<8xf32> to vector<8x1xf32>
    %100 = tpu.reciprocal %99 : vector<8x1xf32> -> vector<8x1xf32>
    %101 = vector.broadcast %100 : vector<8x1xf32> to vector<8x8xf32>
    %102 = arith.mulf %97, %101 : vector<8x8xf32>
    %103 = vector.broadcast %84 : f32 to vector<8x8xf32>
    %104 = arith.mulf %103, %102 : vector<8x8xf32>
    %105 = vector.broadcast %86 : f32 to vector<8x1xf32>
    %106 = arith.mulf %105, %15 : vector<8x1xf32>
    %107 = vector.broadcast %106 : vector<8x1xf32> to vector<8x8xf32>
    %108 = arith.subf %104, %107 : vector<8x8xf32>
    %cst_43 = arith.constant 0.000000e+00 : f32
    %109 = vector.broadcast %cst_43 : f32 to vector<8x8xf32>
    %110 = arith.select %9, %108, %109 : vector<8x8xi1>, vector<8x8xf32>
    %cst_44 = arith.constant 0.000000e+00 : f32
    %111 = vector.broadcast %85 : f32 to vector<8x8xf32>
    %112 = vector.broadcast %cst_44 : f32 to vector<8x8xf32>
    %113 = arith.select %10, %111, %112 : vector<8x8xi1>, vector<8x8xf32>
    %114 = arith.addf %110, %113 : vector<8x8xf32>
    %c0_45 = arith.constant 0 : index
    %c0_46 = arith.constant 0 : index
    %c16_47 = arith.constant 16 : index
    %115 = vector.load %arg3[%c0_45, %c0_46, %c16_47] : memref<1x8x32xf32, #tpu.memory_space<vmem>>, vector<1x8x8xf32>
    %116 = vector.shape_cast %115 : vector<1x8x8xf32> to vector<8x8xf32>
    %cst_48 = arith.constant dense<0.000000e+00> : vector<8x8xf32>
    %117 = tpu.matmul %114, %116, %cst_48 {dimension_numbers = #tpu.dot_dimension_numbers<[1], [0], [0], [1], [0, 0, 1, 1], [], []>} : vector<8x8xf32>, vector<8x8xf32>, vector<8x8xf32> -> vector<8x8xf32>
    %c0_49 = arith.constant 0 : index
    %c3 = arith.constant 3 : index
    %118 = memref.load %arg2[%c0_49, %c3] : memref<3x4xf32, #tpu.memory_space<smem>>
    %c1_50 = arith.constant 1 : index
    %c3_51 = arith.constant 3 : index
    %119 = memref.load %arg2[%c1_50, %c3_51] : memref<3x4xf32, #tpu.memory_space<smem>>
    %c2_52 = arith.constant 2 : index
    %c3_53 = arith.constant 3 : index
    %120 = memref.load %arg2[%c2_52, %c3_53] : memref<3x4xf32, #tpu.memory_space<smem>>
    %121 = arith.index_cast %4 : i32 to index
    %c24 = arith.constant 24 : index
    %122 = vector.load %arg7[%121, %c24] : memref<8x64xf32, #tpu.memory_space<vmem>>, vector<8x8xf32>
    %c0_54 = arith.constant 0 : index
    %c56 = arith.constant 56 : index
    %123 = vector.load %arg7[%c0_54, %c56] : memref<8x64xf32, #tpu.memory_space<vmem>>, vector<8x8xf32>
    %cst_55 = arith.constant dense<0.000000e+00> : vector<8x8xf32>
    %124 = tpu.matmul %122, %123, %cst_55 {dimension_numbers = #tpu.dot_dimension_numbers<[1], [1], [0], [0], [0, 0, 1, 0], [], []>} : vector<8x8xf32>, vector<8x8xf32>, vector<8x8xf32> -> vector<8x8xf32>
    %cst_56 = arith.constant -3.40282347E+38 : f32
    %125 = vector.broadcast %cst_56 : f32 to vector<8x8xf32>
    %126 = arith.select %9, %124, %125 : vector<8x8xi1>, vector<8x8xf32>
    %cst_57 = arith.constant dense<0xFF800000> : vector<8xf32>
    %127 = vector.multi_reduction <maximumf>, %126, %cst_57 [1] : vector<8x8xf32> to vector<8xf32>
    %128 = vector.shape_cast %127 : vector<8xf32> to vector<8x1xf32>
    %129 = vector.broadcast %128 : vector<8x1xf32> to vector<8x8xf32>
    %130 = arith.subf %126, %129 : vector<8x8xf32>
    %131 = math.exp %130 : vector<8x8xf32>
    %cst_58 = arith.constant dense<0.000000e+00> : vector<8xf32>
    %132 = vector.multi_reduction <add>, %131, %cst_58 [1] : vector<8x8xf32> to vector<8xf32>
    %133 = vector.shape_cast %132 : vector<8xf32> to vector<8x1xf32>
    %134 = tpu.reciprocal %133 : vector<8x1xf32> -> vector<8x1xf32>
    %135 = vector.broadcast %134 : vector<8x1xf32> to vector<8x8xf32>
    %136 = arith.mulf %131, %135 : vector<8x8xf32>
    %137 = vector.broadcast %118 : f32 to vector<8x8xf32>
    %138 = arith.mulf %137, %136 : vector<8x8xf32>
    %139 = vector.broadcast %120 : f32 to vector<8x1xf32>
    %140 = arith.mulf %139, %15 : vector<8x1xf32>
    %141 = vector.broadcast %140 : vector<8x1xf32> to vector<8x8xf32>
    %142 = arith.subf %138, %141 : vector<8x8xf32>
    %cst_59 = arith.constant 0.000000e+00 : f32
    %143 = vector.broadcast %cst_59 : f32 to vector<8x8xf32>
    %144 = arith.select %9, %142, %143 : vector<8x8xi1>, vector<8x8xf32>
    %cst_60 = arith.constant 0.000000e+00 : f32
    %145 = vector.broadcast %119 : f32 to vector<8x8xf32>
    %146 = vector.broadcast %cst_60 : f32 to vector<8x8xf32>
    %147 = arith.select %10, %145, %146 : vector<8x8xi1>, vector<8x8xf32>
    %148 = arith.addf %144, %147 : vector<8x8xf32>
    %c0_61 = arith.constant 0 : index
    %c0_62 = arith.constant 0 : index
    %c24_63 = arith.constant 24 : index
    %149 = vector.load %arg3[%c0_61, %c0_62, %c24_63] : memref<1x8x32xf32, #tpu.memory_space<vmem>>, vector<1x8x8xf32>
    %150 = vector.shape_cast %149 : vector<1x8x8xf32> to vector<8x8xf32>
    %cst_64 = arith.constant dense<0.000000e+00> : vector<8x8xf32>
    %151 = tpu.matmul %148, %150, %cst_64 {dimension_numbers = #tpu.dot_dimension_numbers<[1], [0], [0], [1], [0, 0, 1, 1], [], []>} : vector<8x8xf32>, vector<8x8xf32>, vector<8x8xf32> -> vector<8x8xf32>
    %152 = tpu.concatenate %49, %83, %117, %151 in 1 : vector<8x8xf32>, vector<8x8xf32>, vector<8x8xf32>, vector<8x8xf32> -> vector<8x32xf32>
    %c0_65 = arith.constant 0 : index
    %c0_66 = arith.constant 0 : index
    %c0_67 = arith.constant 0 : index
    %153 = vector.load %arg6[%c0_65, %c0_66, %c0_67] : memref<1x8x32xf32, #tpu.memory_space<vmem>>, vector<1x8x32xf32>
    %154 = vector.shape_cast %153 : vector<1x8x32xf32> to vector<8x32xf32>
    %155 = vector.shape_cast %152 : vector<8x32xf32> to vector<1x8x32xf32>
    tpu.vector_store %arg6[%c0_65, %c0_66, %c0_67], %155 {strides = array<i32>} : memref<1x8x32xf32, #tpu.memory_space<vmem>>, vector<1x8x32xf32>,
    return
  }
  func.func @transform_0(%arg0: i32, %arg1: i32) -> (i32, i32) {
    %c0_i32 = arith.constant 0 : i32
    %c0_i32_0 = arith.constant 0 : i32
    %c0_i32_1 = arith.constant 0 : i32
    return %c0_i32, %c0_i32_0 : i32, i32
  }
  func.func @transform_1(%arg0: i32, %arg1: i32) -> (i32, i32, i32) {
    %c0_i32 = arith.constant 0 : i32
    %c0_i32_0 = arith.constant 0 : i32
    %c0_i32_1 = arith.constant 0 : i32
    return %arg0, %c0_i32, %c0_i32_0 : i32, i32, i32
  }
  func.func @transform_2(%arg0: i32, %arg1: i32) -> (i32, i32) {
    %c0_i32 = arith.constant 0 : i32
    %c0_i32_0 = arith.constant 0 : i32
    %c0_i32_1 = arith.constant 0 : i32
    return %c0_i32, %c0_i32_0 : i32, i32
  }
  func.func @transform_3(%arg0: i32, %arg1: i32) -> (i32, i32) {
    %c0_i32 = arith.constant 0 : i32
    %c0_i32_0 = arith.constant 0 : i32
    %c0_i32_1 = arith.constant 0 : i32
    return %c0_i32, %c0_i32_0 : i32, i32
  }
  func.func @transform_4(%arg0: i32, %arg1: i32) -> (i32, i32, i32) {
    %c0_i32 = arith.constant 0 : i32
    %c0_i32_0 = arith.constant 0 : i32
    return %arg0, %arg1, %c0_i32 : i32, i32, i32
  }
}

</mosaic_0001>

<llo_original>
// kernel: simplified_attention.1
$region0: #{simplified_attention.1}
  #allocation0 [shape = 'u32[]', space=smem, size = 0x4, offset = 0x4, fixed_abs, tag = 'smem constant byte address 0x4 - core index']
  #allocation1 [shape = 'u32[144,128]{1,0:T(1,128)}', space=vmem, size = 0x12000, scoped, tag = 'internal scratch']
  #allocation2 [shape = 'f32[8,64]{1,0:T(8,128)}', space=vmem, size = 0x1000, scoped, tag = 'scratch operand']
  %s0 = inlined_call_operand.vmem [shape: f32[3,4], index: 0, kind: input, shape index: {}]
  %s1 = inlined_call_operand.vmem [shape: f32[2,8,32], index: 1, kind: input, shape index: {}]
  %s2 = inlined_call_operand.hbm [shape: f32[32,64], index: 2, kind: input, shape index: {}]
  %s3 = inlined_call_operand.vmem [shape: f32[1,64], index: 3, kind: input, shape index: {}]
  %s4 = inlined_call_operand.hbm [shape: f32[2,8,32], index: 4, kind: output, shape index: {}]
  %s5 = sld [smem:[#allocation0]]
  $region61: #{simplified_attention.1} parent=0
    _
  %s7 = ssub.s32 1, %s5
  %s8 = scalar_select 0, %s7, %s5
  $region1: #{simplified_attention.1} parent=0
    #allocation3 [shape = 'u8[2048]{0}', space=smem, size = 0x800, scoped, tag = 'input window, operand 0, single buffered']
    #allocation4 [shape = 's32[2]{0}', space=sflag, size = 0x8, scoped, tag = 'scoped memory for simplified_attention.1']
    #allocation5 [shape = 's32[2]{0}', space=sflag, size = 0x8, scoped, tag = 'scoped memory for simplified_attention.1']
    #allocation6 [shape = 's32[2]{0}', space=sflag, size = 0x8, scoped, tag = 'scoped memory for simplified_attention.1']
    #allocation7 [shape = 'u8[16384]{0}', space=vmem, size = 0x4000, scoped, tag = 'input window, operand 2, single buffered']
    #allocation8 [shape = 'u8[8192]{0}', space=vmem, size = 0x2000, scoped, tag = 'output window, operand 0']
    %9 = vsyncpa [#allocation6], 0
    %10 = vsyncpa [#allocation4], 0
    %11 = vsyncpa [#allocation5], 0
    %s12 = scalar_lea.sflag [#allocation5], 1
    %13 = vsyncpa %s12, 0
    loop: start=0, step=1, limit=4
    $region2: #{simplified_attention.1} parent=1 // loop_pre_header
      _
    $region3: #{simplified_attention.1} parent=1 // loop_header
      %s15 = sphi 0, %s19
      %p16 = scmp.ge.s32.totalorder %s15, 4
      %s22 = sphi 0, %s34
      %s23 = sphi 0, %s30
      %s24 = sphi 0, %s22
      %s25 = sphi 0, %s23
      %s26 = sphi 0, %s24
      %s27 = sphi 0, %s25
      %s35 = sphi 0, %s35
      %s37 = sphi 0, %s35
      %s38 = sphi 0, %s37
      %s52 = sphi 0, %s38
      %s58 = sphi 0, %s60
      %s61 = sphi 0, %s58
      %s62 = sphi 0, %s61
      %s78 = sphi 0, %s62
      %s82 = sphi 0, %s82
      %s84 = sphi 0, %s82
      %s85 = sphi 0, %s84
      %s99 = sphi 0, %s85
      %s103 = sphi 0, %s103
      %s105 = sphi 0, %s103
      %s106 = sphi 0, %s105
      %s120 = sphi 0, %s106
      %s128 = sphi 0, %s130
      %s131 = sphi 0, %s128
      %s132 = sphi 0, %s131
      %s148 = sphi 0, %s132
    $region4: #{simplified_attention.1} parent=1 // loop_header_branch
      %18 = sbr.rel (%p16) target = $region8
    $region5: #{simplified_attention.1} parent=1 // loop_body
      %s20 = ssub.s32 %s15, 1
      %s21 = ssub.s32 %s15, 2
      %s28 = sadd.s32 1, %s23
      %p29 = scmp.ge.s32.totalorder %s28, 1
      %s30 = scalar_select %p29, 0, %s28
      %s31 = sadd.s32 1, %s22
      %s32 = scalar_select %p29, %s31, %s22
      %p33 = scmp.ge.s32.totalorder %s32, 2
      %s34 = scalar_select %p33, 0, %s32
      %s36 = sadd.s32 %s35, 1
      %p39 = scmp.eq.s32.totalorder %s15, 1
      %p40 = scmp.ne.s32.totalorder %s35, %s37
      %p41 = scmp.eq.s32.totalorder %s15, 0
      %p42 = por %p40, %p41
      %p43 = scmp.ne.s32.totalorder %s35, %s37
      %p44 = scmp.eq.s32.totalorder %s20, 1
      %p45 = por %p43, %p44
      %p46 = scmp.ne.s32.totalorder %s37, %s38
      %p47 = scmp.eq.s32.totalorder %s20, 0
      %p48 = por %p46, %p47
      %p49 = scmp.ne.s32.totalorder %s37, %s38
      %p50 = scmp.eq.s32.totalorder %s21, 1
      %p51 = por %p49, %p50
      %p53 = scmp.ne.s32.totalorder %s38, %s52
      %p54 = scmp.eq.s32.totalorder %s21, 0
      %p55 = por %p53, %p54
      %s56 = ssub.s32 %s22, %s34
      %p57 = scmp.eq.s32.totalorder %s56, 0
      %s59 = sadd.s32 %s58, 1
      %s60 = scalar_select %p57, %s58, %s59
      %p63 = pneg %p57
      %p64 = scmp.eq.s32.totalorder %s15, 1
      %p65 = por %p63, %p64
      %p66 = scmp.ne.s32.totalorder %s58, %s61
      %p67 = scmp.eq.s32.totalorder %s15, 0
      %p68 = por %p66, %p67
      %p69 = scmp.ne.s32.totalorder %s58, %s61
      %p70 = scmp.eq.s32.totalorder %s20, 1
      %p71 = por %p69, %p70
      %p72 = scmp.ne.s32.totalorder %s61, %s62
      %p73 = scmp.eq.s32.totalorder %s20, 0
      %p74 = por %p72, %p73
      %p75 = scmp.ne.s32.totalorder %s61, %s62
      %p76 = scmp.eq.s32.totalorder %s21, 1
      %p77 = por %p75, %p76
      %p79 = scmp.ne.s32.totalorder %s62, %s78
      %p80 = scmp.eq.s32.totalorder %s21, 0
      %p81 = por %p79, %p80
      %s83 = sadd.s32 %s82, 1
      %p86 = scmp.eq.s32.totalorder %s15, 1
      %p87 = scmp.ne.s32.totalorder %s82, %s84
      %p88 = scmp.eq.s32.totalorder %s15, 0
      %p89 = por %p87, %p88
      %p90 = scmp.ne.s32.totalorder %s82, %s84
      %p91 = scmp.eq.s32.totalorder %s20, 1
      %p92 = por %p90, %p91
      %p93 = scmp.ne.s32.totalorder %s84, %s85
      %p94 = scmp.eq.s32.totalorder %s20, 0
      %p95 = por %p93, %p94
      %p96 = scmp.ne.s32.totalorder %s84, %s85
      %p97 = scmp.eq.s32.totalorder %s21, 1
      %p98 = por %p96, %p97
      %p100 = scmp.ne.s32.totalorder %s85, %s99
      %p101 = scmp.eq.s32.totalorder %s21, 0
      %p102 = por %p100, %p101
      %s104 = sadd.s32 %s103, 1
      %p107 = scmp.eq.s32.totalorder %s15, 1
      %p108 = scmp.ne.s32.totalorder %s103, %s105
      %p109 = scmp.eq.s32.totalorder %s15, 0
      %p110 = por %p108, %p109
      %p111 = scmp.ne.s32.totalorder %s103, %s105
      %p112 = scmp.eq.s32.totalorder %s20, 1
      %p113 = por %p111, %p112
      %p114 = scmp.ne.s32.totalorder %s105, %s106
      %p115 = scmp.eq.s32.totalorder %s20, 0
      %p116 = por %p114, %p115
      %p117 = scmp.ne.s32.totalorder %s105, %s106
      %p118 = scmp.eq.s32.totalorder %s21, 1
      %p119 = por %p117, %p118
      %p121 = scmp.ne.s32.totalorder %s106, %s120
      %p122 = scmp.eq.s32.totalorder %s21, 0
      %p123 = por %p121, %p122
      %s124 = ssub.s32 %s22, %s34
      %s125 = ssub.s32 %s23, %s30
      %s126 = sor.u32 %s124, %s125
      %p127 = scmp.eq.s32.totalorder %s126, 0
      %s129 = sadd.s32 %s128, 1
      %s130 = scalar_select %p127, %s128, %s129
      %p133 = pneg %p127
      %p134 = scmp.eq.s32.totalorder %s15, 1
      %p135 = por %p133, %p134
      %p136 = scmp.ne.s32.totalorder %s128, %s131
      %p137 = scmp.eq.s32.totalorder %s15, 0
      %p138 = por %p136, %p137
      %p139 = scmp.ne.s32.totalorder %s128, %s131
      %p140 = scmp.eq.s32.totalorder %s20, 1
      %p141 = por %p139, %p140
      %p142 = scmp.ne.s32.totalorder %s131, %s132
      %p143 = scmp.eq.s32.totalorder %s20, 0
      %p144 = por %p142, %p143
      %p145 = scmp.ne.s32.totalorder %s131, %s132
      %p146 = scmp.eq.s32.totalorder %s21, 1
      %p147 = por %p145, %p146
      %p149 = scmp.ne.s32.totalorder %s132, %s148
      %p150 = scmp.eq.s32.totalorder %s21, 0
      %p151 = por %p149, %p150
      %p152 = scmp.le.s32.totalorder 1, %s15
      %p153 = scmp.lt.s32.totalorder %s15, 3
      %p154 = pnand %p152, %p153
      %p155 = pneg %p154
      // Predicated region
      $region9: #{simplified_attention.1} parent=5 // pred_check
        _
      $region10: #{simplified_attention.1} parent=5 // pred_check_branch
        %157 = sbr.rel (%p154) target = $region12
      $region11: #{simplified_attention.1} parent=5 // pred_region
        %s158 = ssub.s32 %s15, 1
        // Predicated region
        $region13: #{simplified_attention.1} parent=11 // pred_check
          %p159 = pneg %p48
        $region14: #{simplified_attention.1} parent=11 // pred_check_branch
          %161 = sbr.rel (%p159) target = $region16
        $region15: #{simplified_attention.1} parent=11 // pred_region
          %s163 = ssub.s32 64, 64
          %164 = vsyncadd [#allocation6], %s163
          %s166 = sshll.u32 %s0, 4
          %s167 = int_to_ptr.vmem [resolvable:$true] %s166
          %169 = dma.vmem_to_smem %s167, 64, [#allocation3], [#allocation6]
        $region16: #{simplified_attention.1} parent=11 // pred_fallthru
          _
        // Predicated region
        $region17: #{simplified_attention.1} parent=11 // pred_check
          %p170 = pneg %p95
        $region18: #{simplified_attention.1} parent=11 // pred_check_branch
          %172 = sbr.rel (%p170) target = $region20
        $region19: #{simplified_attention.1} parent=11 // pred_region
          %s174 = ssub.s32 512, 512
          %175 = vsyncadd [#allocation4], %s174
          %s176 = sshll.u32 [#allocation7], 4
          %s177 = int_to_ptr.vmem [resolvable:$true] %s176
          %182 = dma.hbm_to_vmem [thread:$0]  %s2, 512, %s177, [#allocation4], 128, 128, 8
        $region20: #{simplified_attention.1} parent=11 // pred_fallthru
          _
        // Predicated region
        $region21: #{simplified_attention.1} parent=11 // pred_check
          %p183 = pneg %p116
        $region22: #{simplified_attention.1} parent=11 // pred_check_branch
          %185 = sbr.rel (%p183) target = $region24
        $region23: #{simplified_attention.1} parent=11 // pred_region
          _
        $region24: #{simplified_attention.1} parent=11 // pred_fallthru
          _
      $region12: #{simplified_attention.1} parent=5 // pred_fallthru
        _
      %p186 = scmp.lt.s32.totalorder %s15, 2
      // Predicated region
      $region25: #{simplified_attention.1} parent=5 // pred_check
        %p187 = pneg %p186
      $region26: #{simplified_attention.1} parent=5 // pred_check_branch
        %189 = sbr.rel (%p187) target = $region28
      $region27: #{simplified_attention.1} parent=5 // pred_region
        // Predicated region
        $region29: #{simplified_attention.1} parent=27 // pred_check
          %p190 = pneg %p68
        $region30: #{simplified_attention.1} parent=27 // pred_check_branch
          %192 = sbr.rel (%p190) target = $region32
        $region31: #{simplified_attention.1} parent=27 // pred_region
          %p193 = scmp.lt.s32.totalorder %s22, 1
          %s194 = scalar_select %p193, %s22, 1
          %s195 = smul.addr %s194, 8
          %s196 = scalar_lea.vmem %s1, %s195
        $region32: #{simplified_attention.1} parent=27 // pred_fallthru
          _
      $region28: #{simplified_attention.1} parent=5 // pred_fallthru
        _
      %p197 = scmp.le.s32.totalorder 1, %s15
      %p198 = scmp.lt.s32.totalorder %s15, 3
      %p199 = pnand %p197, %p198
      %p200 = pneg %p199
      // Predicated region
      $region33: #{simplified_attention.1} parent=5 // pred_check
        _
      $region34: #{simplified_attention.1} parent=5 // pred_check_branch
        %202 = sbr.rel (%p199) target = $region36
      $region35: #{simplified_attention.1} parent=5 // pred_region
        %s203 = ssub.s32 %s15, 1
        // Predicated region
        $region37: #{simplified_attention.1} parent=35 // pred_check
          %p204 = pneg %p48
        $region38: #{simplified_attention.1} parent=35 // pred_check_branch
          %206 = sbr.rel (%p204) target = $region40
        $region39: #{simplified_attention.1} parent=35 // pred_region
          %207 = dma.done [#allocation6], 64
        $region40: #{simplified_attention.1} parent=35 // pred_fallthru
          _
        // Predicated region
        $region41: #{simplified_attention.1} parent=35 // pred_check
          %p208 = pneg %p95
        $region42: #{simplified_attention.1} parent=35 // pred_check_branch
          %210 = sbr.rel (%p208) target = $region44
        $region43: #{simplified_attention.1} parent=35 // pred_region
          %211 = dma.done [#allocation4], 512
        $region44: #{simplified_attention.1} parent=35 // pred_fallthru
          _
        %212 = sfence
        %p213 = pneg %p48
        %p214 = pneg %p45
        %p215 = scmp.lt.s32.totalorder %s24, 1
        %s216 = scalar_select %p215, %s24, 1
        %s217 = smul.addr %s216, 8
        %s218 = scalar_lea.vmem %s1, %s217
        %p219 = pneg %p74
        %p220 = pneg %p71
        %p221 = pneg %p95
        %p222 = pneg %p92
        %p223 = pneg %p116
        %p224 = pneg %p113
        %p225 = pneg %p144
        %p226 = pneg %p141
        %s227 = sand.u32 %s131, 1
        %s228 = scalar_lea.sflag [#allocation5], %s227
        %s229 = sand.u32 %s131, 1
        %s230 = smul.addr %s229, 8
        %s231 = scalar_lea.vmem [#allocation8], %s230
        %p232 = scmp.lt.s32.totalorder %s24, 1
        %s233 = scalar_select %p232, %s24, 1
        %s234 = smul.addr %s233, 8
        %s235 = scalar_lea.vmem %s1, %s234
        %p236 = scmp.eq.s32.totalorder %s25, 0
        // Predicated region
        $region45: #{simplified_attention.1} parent=35 // pred_check
          %p237 = pneg %p236
        $region46: #{simplified_attention.1} parent=35 // pred_check_branch
          %239 = sbr.rel (%p237) target = $region48
        $region47: #{simplified_attention.1} parent=35 // pred_region
          %v240 = vld [vmem:[%s235] sm:$0xff]
          %v241 = vld [vmem:[#allocation7] sm:$0xff]
          %v242 = vld [vmem:[#allocation7 + $0x8] sm:$0xff]
          %v243 = vld [vmem:[#allocation7 + $0x10] sm:$0xff]
          %v244 = vld [vmem:[#allocation7 + $0x18] sm:$0xff]
          %v245 = vld [vmem:[%s3] sm:$0x1]
          %v247 = vlaneseq
          %v248 = vshrl.u32 %v247, 7
          %v249 = vsub.s32 0, %v248
          %v250 = vrot.slane %v245, %v249
          %vm252 = vcmask 261120
          %v254 = vsel %vm252, %v240, 0
          %256 = vmatprep.subr.mxu0 0.0
          %257 = vmatpush1.msra.mxu0 %v241
          %258 = vmatprep.subr.mxu0 0.0
          %259 = vmatpush1.msra.mxu0 %v242
          %260 = vmatprep.subr.mxu0 0.0
          %261 = vmatpush1.msra.mxu0 %v243
          %262 = vmatprep.subr.mxu0 0.0
          %263 = vmatpush1.msra.mxu0 %v244
          %264 = vmatprep.subr.mxu0 0.0
          %265 = vmatpush1.msra.mxu0 0.0
          %266 = vmatprep.subr.mxu0 0.0
          %267 = vmatpush1.msra.mxu0 0.0
          %268 = vmatprep.subr.mxu0 0.0
          %269 = vmatpush1.msra.mxu0 0.0
          %270 = vmatprep.subr.mxu0 0.0
          %271 = vmatpush1.msra.mxu0 0.0
          %272 = vmatprep.subr.mxu0 0.0
          %273 = vmatpush1.msra.mxu0 0.0
          %274 = vmatprep.subr.mxu0 0.0
          %275 = vmatpush1.msra.mxu0 0.0
          %276 = vmatprep.subr.mxu0 0.0
          %277 = vmatpush1.msra.mxu0 0.0
          %278 = vmatprep.subr.mxu0 0.0
          %279 = vmatpush1.msra.mxu0 0.0
          %280 = vmatprep.subr.mxu0 0.0
          %281 = vmatpush1.msra.mxu0 0.0
          %282 = vmatprep.subr.mxu0 0.0
          %283 = vmatpush1.msra.mxu0 0.0
          %284 = vmatprep.subr.mxu0 0.0
          %285 = vmatpush1.msra.mxu0 0.0
          %286 = vmatprep.subr.mxu0 0.0
          %287 = vmatpush1.msra.mxu0 0.0
          %288 = vmatprep.subr.mxu0 0.0
          %289 = vmatpush1.msra.mxu0 0.0
          %290 = vmatprep.subr.mxu0 0.0
          %291 = vmatpush1.msra.mxu0 0.0
          %292 = vmatprep.subr.mxu0 0.0
          %293 = vmatpush1.msra.mxu0 0.0
          %294 = vmatprep.subr.mxu0 0.0
          %295 = vmatpush1.msra.mxu0 0.0
          %296 = vmatprep.subr.mxu0 0.0
          %297 = vmatpush1.msra.mxu0 0.0
          %298 = vmatprep.subr.mxu0 0.0
          %299 = vmatpush1.msra.mxu0 0.0
          %300 = vmatprep.subr.mxu0 0.0
          %301 = vmatpush1.msra.mxu0 0.0
          %302 = vmatprep.subr.mxu0 0.0
          %303 = vmatpush1.msra.mxu0 0.0
          %304 = vmatprep.subr.mxu0 0.0
          %305 = vmatpush1.msra.mxu0 0.0
          %306 = vmatprep.subr.mxu0 0.0
          %307 = vmatpush1.msra.mxu0 0.0
          %308 = vmatprep.subr.mxu0 0.0
          %309 = vmatpush1.msra.mxu0 0.0
          %310 = vmatprep.subr.mxu0 0.0
          %311 = vmatpush1.msra.mxu0 0.0
          %312 = vmatprep.subr.mxu0 0.0
          %313 = vmatpush1.msra.mxu0 0.0
          %314 = vmatprep.subr.mxu0 0.0
          %315 = vmatpush1.msra.mxu0 0.0
          %316 = vmatprep.subr.mxu0 0.0
          %317 = vmatpush1.msra.mxu0 0.0
          %318 = vmatprep.subr.mxu0 0.0
          %319 = vmatpush1.msra.mxu0 0.0
          %320 = vmatprep.mubr.f32.mxu0 0.0
          %321 = vmatmul.mubr.f32.gmra.mrb[0].mxu0 %v254
          %v322 = vpop.f32.mrb[0].mxu0
          %v323 = vadd.f32 %v250, %v322
          %v324 = vpop.f32.mrb[0].mxu0
          %325 = vdwg.mxu0
          %vm326 = vcmask 523264
          %327 = vst.msk [vmem:[#allocation2] sm:$0xff] %vm326, %v323
        $region48: #{simplified_attention.1} parent=35 // pred_fallthru
          _
        %s328 = smul.u32 %s25, 8
        %v329 = vlaneseq
        %v330 = vshrl.u32 %v329, 7
        %v331 = vstv %s328
        %v332 = vadd.s32 %v331, %v330
        %v333 = vlaneseq
        %v334 = vand.u32 %v333, 127
        %vm335 = vcmp.le.s32.totalorder %v334, %v332
        %vm336 = vcmp.eq.s32.totalorder %v334, %v332
        %v337 = vadd.s32 %v332, 1
        %v338 = vcvt.s32.f32 %v337
        %v339 = vrcp.pop %v338
        %s340 = sld [smem:[#allocation3]]
        %s341 = sld [smem:[#allocation3 + $0x80]]
        %s342 = sld [smem:[#allocation3 + $0x100]]
        %s343 = scalar_lea.vmem [#allocation2], %s328
        %v344 = vld [vmem:[%s343] sm:$0xff]
        %v345 = vld [vmem:[#allocation2] sm:$0xff]
        %347 = vrot.lane.b32.xlu0 %v345, 96
        %v348 = vpop.permute.xlu0 %347
        %vm349 = vcmask 64512
        %v351 = vsel %vm349, %v344, 0
        %v353 = vsel %vm349, %v348, 0
        %355 = vmatprep.subr.mxu0 0.0
        %356 = vmatpush1.xpose.msra.mxu0 %v353
        %357 = vmatprep.subr.mxu0 0.0
        %358 = vmatpush1.xpose.msra.mxu0 0.0
        %359 = vmatprep.subr.mxu0 0.0
        %360 = vmatpush1.xpose.msra.mxu0 0.0
        %361 = vmatprep.subr.mxu0 0.0
        %362 = vmatpush1.xpose.msra.mxu0 0.0
        %363 = vmatprep.subr.mxu0 0.0
        %364 = vmatpush1.xpose.msra.mxu0 0.0
        %365 = vmatprep.subr.mxu0 0.0
        %366 = vmatpush1.xpose.msra.mxu0 0.0
        %367 = vmatprep.subr.mxu0 0.0
        %368 = vmatpush1.xpose.msra.mxu0 0.0
        %369 = vmatprep.subr.mxu0 0.0
        %370 = vmatpush1.xpose.msra.mxu0 0.0
        %371 = vmatprep.subr.mxu0 0.0
        %372 = vmatpush1.xpose.msra.mxu0 0.0
        %373 = vmatprep.subr.mxu0 0.0
        %374 = vmatpush1.xpose.msra.mxu0 0.0
        %375 = vmatprep.subr.mxu0 0.0
        %376 = vmatpush1.xpose.msra.mxu0 0.0
        %377 = vmatprep.subr.mxu0 0.0
        %378 = vmatpush1.xpose.msra.mxu0 0.0
        %379 = vmatprep.subr.mxu0 0.0
        %380 = vmatpush1.xpose.msra.mxu0 0.0
        %381 = vmatprep.subr.mxu0 0.0
        %382 = vmatpush1.xpose.msra.mxu0 0.0
        %383 = vmatprep.subr.mxu0 0.0
        %384 = vmatpush1.xpose.msra.mxu0 0.0
        %385 = vmatprep.subr.mxu0 0.0
        %386 = vmatpush1.xpose.msra.mxu0 0.0
        %387 = vmatprep.subr.mxu0 0.0
        %388 = vmatpush1.xpose.msra.mxu0 0.0
        %389 = vmatprep.subr.mxu0 0.0
        %390 = vmatpush1.xpose.msra.mxu0 0.0
        %391 = vmatprep.subr.mxu0 0.0
        %392 = vmatpush1.xpose.msra.mxu0 0.0
        %393 = vmatprep.subr.mxu0 0.0
        %394 = vmatpush1.xpose.msra.mxu0 0.0
        %395 = vmatprep.subr.mxu0 0.0
        %396 = vmatpush1.xpose.msra.mxu0 0.0
        %397 = vmatprep.subr.mxu0 0.0
        %398 = vmatpush1.xpose.msra.mxu0 0.0
        %399 = vmatprep.subr.mxu0 0.0
        %400 = vmatpush1.xpose.msra.mxu0 0.0
        %401 = vmatprep.subr.mxu0 0.0
        %402 = vmatpush1.xpose.msra.mxu0 0.0
        %403 = vmatprep.subr.mxu0 0.0
        %404 = vmatpush1.xpose.msra.mxu0 0.0
        %405 = vmatprep.subr.mxu0 0.0
        %406 = vmatpush1.xpose.msra.mxu0 0.0
        %407 = vmatprep.subr.mxu0 0.0
        %408 = vmatpush1.xpose.msra.mxu0 0.0
        %409 = vmatprep.subr.mxu0 0.0
        %410 = vmatpush1.xpose.msra.mxu0 0.0
        %411 = vmatprep.subr.mxu0 0.0
        %412 = vmatpush1.xpose.msra.mxu0 0.0
        %413 = vmatprep.subr.mxu0 0.0
        %414 = vmatpush1.xpose.msra.mxu0 0.0
        %415 = vmatprep.subr.mxu0 0.0
        %416 = vmatpush1.xpose.msra.mxu0 0.0
        %417 = vmatprep.subr.mxu0 0.0
        %418 = vmatpush1.xpose.msra.mxu0 0.0
        %419 = vmatprep.mubr.f32.mxu0 0.0
        %420 = vmatmul.mubr.f32.gmra.mrb[0].mxu0 %v351
        %v421 = vpop.f32.mrb[0].mxu0
        %v422 = vadd.f32 0.0, %v421
        %v423 = vpop.f32.mrb[0].mxu0
        %424 = vdwg.mxu0
        %v425 = vsel %vm335, %v422, -3.4028235e+38
        %v426 = vsel %vm349, %v425, -inf
        %427 = vmax.xlane.f32.xlu0 %v426
        %v428 = vpop.xlane.xlu0 %427
        %v429 = vsub.f32 %v425, %v428
        %v430 = vmul.f32 %v429, 1.442695
        %v431 = vpow.pop %v430
        %v432 = vsel %vm349, %v431, 0.0
        %433 = vadd.xlane.f32.xlu0 %v432
        %v434 = vpop.xlane.xlu0 %433
        %v435 = vrcp.pop %v434
        %v436 = vmul.f32 %v431, %v435
        %v437 = vstv %s340
        %v438 = vmul.f32 %v437, %v436
        %v439 = vstv %s342
        %v440 = vmul.f32 %v439, %v339
        %v441 = vsub.f32 %v438, %v440
        %v442 = vsel %vm335, %v441, 0.0
        %v443 = vstv %s341
        %v444 = vsel %vm336, %v443, 0.0
        %v445 = vadd.f32 %v442, %v444
        %v446 = vld [vmem:[%s235] sm:$0xff]
        %v448 = vsel %vm349, %v445, 0
        %450 = vmatprep.subr.mxu0 0.0
        %451 = vmatpush1.msra.mxu0 %v446
        %452 = vmatprep.subr.mxu0 0.0
        %453 = vmatpush1.msra.mxu0 0.0
        %454 = vmatprep.subr.mxu0 0.0
        %455 = vmatpush1.msra.mxu0 0.0
        %456 = vmatprep.subr.mxu0 0.0
        %457 = vmatpush1.msra.mxu0 0.0
        %458 = vmatprep.subr.mxu0 0.0
        %459 = vmatpush1.msra.mxu0 0.0
        %460 = vmatprep.subr.mxu0 0.0
        %461 = vmatpush1.msra.mxu0 0.0
        %462 = vmatprep.subr.mxu0 0.0
        %463 = vmatpush1.msra.mxu0 0.0
        %464 = vmatprep.subr.mxu0 0.0
        %465 = vmatpush1.msra.mxu0 0.0
        %466 = vmatprep.subr.mxu0 0.0
        %467 = vmatpush1.msra.mxu0 0.0
        %468 = vmatprep.subr.mxu0 0.0
        %469 = vmatpush1.msra.mxu0 0.0
        %470 = vmatprep.subr.mxu0 0.0
        %471 = vmatpush1.msra.mxu0 0.0
        %472 = vmatprep.subr.mxu0 0.0
        %473 = vmatpush1.msra.mxu0 0.0
        %474 = vmatprep.subr.mxu0 0.0
        %475 = vmatpush1.msra.mxu0 0.0
        %476 = vmatprep.subr.mxu0 0.0
        %477 = vmatpush1.msra.mxu0 0.0
        %478 = vmatprep.subr.mxu0 0.0
        %479 = vmatpush1.msra.mxu0 0.0
        %480 = vmatprep.subr.mxu0 0.0
        %481 = vmatpush1.msra.mxu0 0.0
        %482 = vmatprep.subr.mxu0 0.0
        %483 = vmatpush1.msra.mxu0 0.0
        %484 = vmatprep.subr.mxu0 0.0
        %485 = vmatpush1.msra.mxu0 0.0
        %486 = vmatprep.subr.mxu0 0.0
        %487 = vmatpush1.msra.mxu0 0.0
        %488 = vmatprep.subr.mxu0 0.0
        %489 = vmatpush1.msra.mxu0 0.0
        %490 = vmatprep.subr.mxu0 0.0
        %491 = vmatpush1.msra.mxu0 0.0
        %492 = vmatprep.subr.mxu0 0.0
        %493 = vmatpush1.msra.mxu0 0.0
        %494 = vmatprep.subr.mxu0 0.0
        %495 = vmatpush1.msra.mxu0 0.0
        %496 = vmatprep.subr.mxu0 0.0
        %497 = vmatpush1.msra.mxu0 0.0
        %498 = vmatprep.subr.mxu0 0.0
        %499 = vmatpush1.msra.mxu0 0.0
        %500 = vmatprep.subr.mxu0 0.0
        %501 = vmatpush1.msra.mxu0 0.0
        %502 = vmatprep.subr.mxu0 0.0
        %503 = vmatpush1.msra.mxu0 0.0
        %504 = vmatprep.subr.mxu0 0.0
        %505 = vmatpush1.msra.mxu0 0.0
        %506 = vmatprep.subr.mxu0 0.0
        %507 = vmatpush1.msra.mxu0 0.0
        %508 = vmatprep.subr.mxu0 0.0
        %509 = vmatpush1.msra.mxu0 0.0
        %510 = vmatprep.subr.mxu0 0.0
        %511 = vmatpush1.msra.mxu0 0.0
        %512 = vmatprep.subr.mxu0 0.0
        %513 = vmatpush1.msra.mxu0 0.0
        %514 = vmatprep.mubr.f32.mxu0 0.0
        %515 = vmatmul.mubr.f32.gmra.mrb[0].mxu0 %v448
        %v516 = vpop.f32.mrb[0].mxu0
        %v517 = vadd.f32 0.0, %v516
        %v518 = vpop.f32.mrb[0].mxu0
        %519 = vdwg.mxu0
        %s520 = sld [smem:[#allocation3 + $0x1]]
        %s521 = sld [smem:[#allocation3 + $0x81]]
        %s522 = sld [smem:[#allocation3 + $0x101]]
        %523 = vrot.lane.b32.xlu0 %v344, 120
        %v524 = vpop.permute.xlu0 %523
        %525 = vrot.lane.b32.xlu0 %v345, 88
        %v526 = vpop.permute.xlu0 %525
        %v527 = vsel %vm349, %v524, 0
        %v529 = vsel %vm349, %v526, 0
        %531 = vmatprep.subr.mxu0 0.0
        %532 = vmatpush1.xpose.msra.mxu0 %v529
        %533 = vmatprep.subr.mxu0 0.0
        %534 = vmatpush1.xpose.msra.mxu0 0.0
        %535 = vmatprep.subr.mxu0 0.0
        %536 = vmatpush1.xpose.msra.mxu0 0.0
        %537 = vmatprep.subr.mxu0 0.0
        %538 = vmatpush1.xpose.msra.mxu0 0.0
        %539 = vmatprep.subr.mxu0 0.0
        %540 = vmatpush1.xpose.msra.mxu0 0.0
        %541 = vmatprep.subr.mxu0 0.0
        %542 = vmatpush1.xpose.msra.mxu0 0.0
        %543 = vmatprep.subr.mxu0 0.0
        %544 = vmatpush1.xpose.msra.mxu0 0.0
        %545 = vmatprep.subr.mxu0 0.0
        %546 = vmatpush1.xpose.msra.mxu0 0.0
        %547 = vmatprep.subr.mxu0 0.0
        %548 = vmatpush1.xpose.msra.mxu0 0.0
        %549 = vmatprep.subr.mxu0 0.0
        %550 = vmatpush1.xpose.msra.mxu0 0.0
        %551 = vmatprep.subr.mxu0 0.0
        %552 = vmatpush1.xpose.msra.mxu0 0.0
        %553 = vmatprep.subr.mxu0 0.0
        %554 = vmatpush1.xpose.msra.mxu0 0.0
        %555 = vmatprep.subr.mxu0 0.0
        %556 = vmatpush1.xpose.msra.mxu0 0.0
        %557 = vmatprep.subr.mxu0 0.0
        %558 = vmatpush1.xpose.msra.mxu0 0.0
        %559 = vmatprep.subr.mxu0 0.0
        %560 = vmatpush1.xpose.msra.mxu0 0.0
        %561 = vmatprep.subr.mxu0 0.0
        %562 = vmatpush1.xpose.msra.mxu0 0.0
        %563 = vmatprep.subr.mxu0 0.0
        %564 = vmatpush1.xpose.msra.mxu0 0.0
        %565 = vmatprep.subr.mxu0 0.0
        %566 = vmatpush1.xpose.msra.mxu0 0.0
        %567 = vmatprep.subr.mxu0 0.0
        %568 = vmatpush1.xpose.msra.mxu0 0.0
        %569 = vmatprep.subr.mxu0 0.0
        %570 = vmatpush1.xpose.msra.mxu0 0.0
        %571 = vmatprep.subr.mxu0 0.0
        %572 = vmatpush1.xpose.msra.mxu0 0.0
        %573 = vmatprep.subr.mxu0 0.0
        %574 = vmatpush1.xpose.msra.mxu0 0.0
        %575 = vmatprep.subr.mxu0 0.0
        %576 = vmatpush1.xpose.msra.mxu0 0.0
        %577 = vmatprep.subr.mxu0 0.0
        %578 = vmatpush1.xpose.msra.mxu0 0.0
        %579 = vmatprep.subr.mxu0 0.0
        %580 = vmatpush1.xpose.msra.mxu0 0.0
        %581 = vmatprep.subr.mxu0 0.0
        %582 = vmatpush1.xpose.msra.mxu0 0.0
        %583 = vmatprep.subr.mxu0 0.0
        %584 = vmatpush1.xpose.msra.mxu0 0.0
        %585 = vmatprep.subr.mxu0 0.0
        %586 = vmatpush1.xpose.msra.mxu0 0.0
        %587 = vmatprep.subr.mxu0 0.0
        %588 = vmatpush1.xpose.msra.mxu0 0.0
        %589 = vmatprep.subr.mxu0 0.0
        %590 = vmatpush1.xpose.msra.mxu0 0.0
        %591 = vmatprep.subr.mxu0 0.0
        %592 = vmatpush1.xpose.msra.mxu0 0.0
        %593 = vmatprep.subr.mxu0 0.0
        %594 = vmatpush1.xpose.msra.mxu0 0.0
        %595 = vmatprep.mubr.f32.mxu0 0.0
        %596 = vmatmul.mubr.f32.gmra.mrb[0].mxu0 %v527
        %v597 = vpop.f32.mrb[0].mxu0
        %v598 = vadd.f32 0.0, %v597
        %v599 = vpop.f32.mrb[0].mxu0
        %600 = vdwg.mxu0
        %v601 = vsel %vm335, %v598, -3.4028235e+38
        %v602 = vsel %vm349, %v601, -inf
        %603 = vmax.xlane.f32.xlu0 %v602
        %v604 = vpop.xlane.xlu0 %603
        %v605 = vsub.f32 %v601, %v604
        %v606 = vmul.f32 %v605, 1.442695
        %v607 = vpow.pop %v606
        %v608 = vsel %vm349, %v607, 0.0
        %609 = vadd.xlane.f32.xlu0 %v608
        %v610 = vpop.xlane.xlu0 %609
        %v611 = vrcp.pop %v610
        %v612 = vmul.f32 %v607, %v611
        %v613 = vstv %s520
        %v614 = vmul.f32 %v613, %v612
        %v615 = vstv %s522
        %v616 = vmul.f32 %v615, %v339
        %v617 = vsub.f32 %v614, %v616
        %v618 = vsel %vm335, %v617, 0.0
        %v619 = vstv %s521
        %v620 = vsel %vm336, %v619, 0.0
        %v621 = vadd.f32 %v618, %v620
        %623 = vrot.lane.b32.xlu0 %v446, 120
        %v624 = vpop.permute.xlu0 %623
        %v627 = vsel %vm349, %v621, 0
        %629 = vmatprep.subr.mxu0 0.0
        %630 = vmatpush1.msra.mxu0 %v624
        %631 = vmatprep.subr.mxu0 0.0
        %632 = vmatpush1.msra.mxu0 0.0
        %633 = vmatprep.subr.mxu0 0.0
        %634 = vmatpush1.msra.mxu0 0.0
        %635 = vmatprep.subr.mxu0 0.0
        %636 = vmatpush1.msra.mxu0 0.0
        %637 = vmatprep.subr.mxu0 0.0
        %638 = vmatpush1.msra.mxu0 0.0
        %639 = vmatprep.subr.mxu0 0.0
        %640 = vmatpush1.msra.mxu0 0.0
        %641 = vmatprep.subr.mxu0 0.0
        %642 = vmatpush1.msra.mxu0 0.0
        %643 = vmatprep.subr.mxu0 0.0
        %644 = vmatpush1.msra.mxu0 0.0
        %645 = vmatprep.subr.mxu0 0.0
        %646 = vmatpush1.msra.mxu0 0.0
        %647 = vmatprep.subr.mxu0 0.0
        %648 = vmatpush1.msra.mxu0 0.0
        %649 = vmatprep.subr.mxu0 0.0
        %650 = vmatpush1.msra.mxu0 0.0
        %651 = vmatprep.subr.mxu0 0.0
        %652 = vmatpush1.msra.mxu0 0.0
        %653 = vmatprep.subr.mxu0 0.0
        %654 = vmatpush1.msra.mxu0 0.0
        %655 = vmatprep.subr.mxu0 0.0
        %656 = vmatpush1.msra.mxu0 0.0
        %657 = vmatprep.subr.mxu0 0.0
        %658 = vmatpush1.msra.mxu0 0.0
        %659 = vmatprep.subr.mxu0 0.0
        %660 = vmatpush1.msra.mxu0 0.0
        %661 = vmatprep.subr.mxu0 0.0
        %662 = vmatpush1.msra.mxu0 0.0
        %663 = vmatprep.subr.mxu0 0.0
        %664 = vmatpush1.msra.mxu0 0.0
        %665 = vmatprep.subr.mxu0 0.0
        %666 = vmatpush1.msra.mxu0 0.0
        %667 = vmatprep.subr.mxu0 0.0
        %668 = vmatpush1.msra.mxu0 0.0
        %669 = vmatprep.subr.mxu0 0.0
        %670 = vmatpush1.msra.mxu0 0.0
        %671 = vmatprep.subr.mxu0 0.0
        %672 = vmatpush1.msra.mxu0 0.0
        %673 = vmatprep.subr.mxu0 0.0
        %674 = vmatpush1.msra.mxu0 0.0
        %675 = vmatprep.subr.mxu0 0.0
        %676 = vmatpush1.msra.mxu0 0.0
        %677 = vmatprep.subr.mxu0 0.0
        %678 = vmatpush1.msra.mxu0 0.0
        %679 = vmatprep.subr.mxu0 0.0
        %680 = vmatpush1.msra.mxu0 0.0
        %681 = vmatprep.subr.mxu0 0.0
        %682 = vmatpush1.msra.mxu0 0.0
        %683 = vmatprep.subr.mxu0 0.0
        %684 = vmatpush1.msra.mxu0 0.0
        %685 = vmatprep.subr.mxu0 0.0
        %686 = vmatpush1.msra.mxu0 0.0
        %687 = vmatprep.subr.mxu0 0.0
        %688 = vmatpush1.msra.mxu0 0.0
        %689 = vmatprep.subr.mxu0 0.0
        %690 = vmatpush1.msra.mxu0 0.0
        %691 = vmatprep.subr.mxu0 0.0
        %692 = vmatpush1.msra.mxu0 0.0
        %693 = vmatprep.mubr.f32.mxu0 0.0
        %694 = vmatmul.mubr.f32.gmra.mrb[0].mxu0 %v627
        %v695 = vpop.f32.mrb[0].mxu0
        %v696 = vadd.f32 0.0, %v695
        %v697 = vpop.f32.mrb[0].mxu0
        %698 = vdwg.mxu0
        %s699 = sld [smem:[#allocation3 + $0x2]]
        %s700 = sld [smem:[#allocation3 + $0x82]]
        %s701 = sld [smem:[#allocation3 + $0x102]]
        %702 = vrot.lane.b32.xlu0 %v344, 112
        %v703 = vpop.permute.xlu0 %702
        %704 = vrot.lane.b32.xlu0 %v345, 80
        %v705 = vpop.permute.xlu0 %704
        %v706 = vsel %vm349, %v703, 0
        %v708 = vsel %vm349, %v705, 0
        %710 = vmatprep.subr.mxu0 0.0
        %711 = vmatpush1.xpose.msra.mxu0 %v708
        %712 = vmatprep.subr.mxu0 0.0
        %713 = vmatpush1.xpose.msra.mxu0 0.0
        %714 = vmatprep.subr.mxu0 0.0
        %715 = vmatpush1.xpose.msra.mxu0 0.0
        %716 = vmatprep.subr.mxu0 0.0
        %717 = vmatpush1.xpose.msra.mxu0 0.0
        %718 = vmatprep.subr.mxu0 0.0
        %719 = vmatpush1.xpose.msra.mxu0 0.0
        %720 = vmatprep.subr.mxu0 0.0
        %721 = vmatpush1.xpose.msra.mxu0 0.0
        %722 = vmatprep.subr.mxu0 0.0
        %723 = vmatpush1.xpose.msra.mxu0 0.0
        %724 = vmatprep.subr.mxu0 0.0
        %725 = vmatpush1.xpose.msra.mxu0 0.0
        %726 = vmatprep.subr.mxu0 0.0
        %727 = vmatpush1.xpose.msra.mxu0 0.0
        %728 = vmatprep.subr.mxu0 0.0
        %729 = vmatpush1.xpose.msra.mxu0 0.0
        %730 = vmatprep.subr.mxu0 0.0
        %731 = vmatpush1.xpose.msra.mxu0 0.0
        %732 = vmatprep.subr.mxu0 0.0
        %733 = vmatpush1.xpose.msra.mxu0 0.0
        %734 = vmatprep.subr.mxu0 0.0
        %735 = vmatpush1.xpose.msra.mxu0 0.0
        %736 = vmatprep.subr.mxu0 0.0
        %737 = vmatpush1.xpose.msra.mxu0 0.0
        %738 = vmatprep.subr.mxu0 0.0
        %739 = vmatpush1.xpose.msra.mxu0 0.0
        %740 = vmatprep.subr.mxu0 0.0
        %741 = vmatpush1.xpose.msra.mxu0 0.0
        %742 = vmatprep.subr.mxu0 0.0
        %743 = vmatpush1.xpose.msra.mxu0 0.0
        %744 = vmatprep.subr.mxu0 0.0
        %745 = vmatpush1.xpose.msra.mxu0 0.0
        %746 = vmatprep.subr.mxu0 0.0
        %747 = vmatpush1.xpose.msra.mxu0 0.0
        %748 = vmatprep.subr.mxu0 0.0
        %749 = vmatpush1.xpose.msra.mxu0 0.0
        %750 = vmatprep.subr.mxu0 0.0
        %751 = vmatpush1.xpose.msra.mxu0 0.0
        %752 = vmatprep.subr.mxu0 0.0
        %753 = vmatpush1.xpose.msra.mxu0 0.0
        %754 = vmatprep.subr.mxu0 0.0
        %755 = vmatpush1.xpose.msra.mxu0 0.0
        %756 = vmatprep.subr.mxu0 0.0
        %757 = vmatpush1.xpose.msra.mxu0 0.0
        %758 = vmatprep.subr.mxu0 0.0
        %759 = vmatpush1.xpose.msra.mxu0 0.0
        %760 = vmatprep.subr.mxu0 0.0
        %761 = vmatpush1.xpose.msra.mxu0 0.0
        %762 = vmatprep.subr.mxu0 0.0
        %763 = vmatpush1.xpose.msra.mxu0 0.0
        %764 = vmatprep.subr.mxu0 0.0
        %765 = vmatpush1.xpose.msra.mxu0 0.0
        %766 = vmatprep.subr.mxu0 0.0
        %767 = vmatpush1.xpose.msra.mxu0 0.0
        %768 = vmatprep.subr.mxu0 0.0
        %769 = vmatpush1.xpose.msra.mxu0 0.0
        %770 = vmatprep.subr.mxu0 0.0
        %771 = vmatpush1.xpose.msra.mxu0 0.0
        %772 = vmatprep.subr.mxu0 0.0
        %773 = vmatpush1.xpose.msra.mxu0 0.0
        %774 = vmatprep.mubr.f32.mxu0 0.0
        %775 = vmatmul.mubr.f32.gmra.mrb[0].mxu0 %v706
        %v776 = vpop.f32.mrb[0].mxu0
        %v777 = vadd.f32 0.0, %v776
        %v778 = vpop.f32.mrb[0].mxu0
        %779 = vdwg.mxu0
        %v780 = vsel %vm335, %v777, -3.4028235e+38
        %v781 = vsel %vm349, %v780, -inf
        %782 = vmax.xlane.f32.xlu0 %v781
        %v783 = vpop.xlane.xlu0 %782
        %v784 = vsub.f32 %v780, %v783
        %v785 = vmul.f32 %v784, 1.442695
        %v786 = vpow.pop %v785
        %v787 = vsel %vm349, %v786, 0.0
        %788 = vadd.xlane.f32.xlu0 %v787
        %v789 = vpop.xlane.xlu0 %788
        %v790 = vrcp.pop %v789
        %v791 = vmul.f32 %v786, %v790
        %v792 = vstv %s699
        %v793 = vmul.f32 %v792, %v791
        %v794 = vstv %s701
        %v795 = vmul.f32 %v794, %v339
        %v796 = vsub.f32 %v793, %v795
        %v797 = vsel %vm335, %v796, 0.0
        %v798 = vstv %s700
        %v799 = vsel %vm336, %v798, 0.0
        %v800 = vadd.f32 %v797, %v799
        %801 = vrot.lane.b32.xlu0 %v446, 112
        %v802 = vpop.permute.xlu0 %801
        %v805 = vsel %vm349, %v800, 0
        %807 = vmatprep.subr.mxu0 0.0
        %808 = vmatpush1.msra.mxu0 %v802
        %809 = vmatprep.subr.mxu0 0.0
        %810 = vmatpush1.msra.mxu0 0.0
        %811 = vmatprep.subr.mxu0 0.0
        %812 = vmatpush1.msra.mxu0 0.0
        %813 = vmatprep.subr.mxu0 0.0
        %814 = vmatpush1.msra.mxu0 0.0
        %815 = vmatprep.subr.mxu0 0.0
        %816 = vmatpush1.msra.mxu0 0.0
        %817 = vmatprep.subr.mxu0 0.0
        %818 = vmatpush1.msra.mxu0 0.0
        %819 = vmatprep.subr.mxu0 0.0
        %820 = vmatpush1.msra.mxu0 0.0
        %821 = vmatprep.subr.mxu0 0.0
        %822 = vmatpush1.msra.mxu0 0.0
        %823 = vmatprep.subr.mxu0 0.0
        %824 = vmatpush1.msra.mxu0 0.0
        %825 = vmatprep.subr.mxu0 0.0
        %826 = vmatpush1.msra.mxu0 0.0
        %827 = vmatprep.subr.mxu0 0.0
        %828 = vmatpush1.msra.mxu0 0.0
        %829 = vmatprep.subr.mxu0 0.0
        %830 = vmatpush1.msra.mxu0 0.0
        %831 = vmatprep.subr.mxu0 0.0
        %832 = vmatpush1.msra.mxu0 0.0
        %833 = vmatprep.subr.mxu0 0.0
        %834 = vmatpush1.msra.mxu0 0.0
        %835 = vmatprep.subr.mxu0 0.0
        %836 = vmatpush1.msra.mxu0 0.0
        %837 = vmatprep.subr.mxu0 0.0
        %838 = vmatpush1.msra.mxu0 0.0
        %839 = vmatprep.subr.mxu0 0.0
        %840 = vmatpush1.msra.mxu0 0.0
        %841 = vmatprep.subr.mxu0 0.0
        %842 = vmatpush1.msra.mxu0 0.0
        %843 = vmatprep.subr.mxu0 0.0
        %844 = vmatpush1.msra.mxu0 0.0
        %845 = vmatprep.subr.mxu0 0.0
        %846 = vmatpush1.msra.mxu0 0.0
        %847 = vmatprep.subr.mxu0 0.0
        %848 = vmatpush1.msra.mxu0 0.0
        %849 = vmatprep.subr.mxu0 0.0
        %850 = vmatpush1.msra.mxu0 0.0
        %851 = vmatprep.subr.mxu0 0.0
        %852 = vmatpush1.msra.mxu0 0.0
        %853 = vmatprep.subr.mxu0 0.0
        %854 = vmatpush1.msra.mxu0 0.0
        %855 = vmatprep.subr.mxu0 0.0
        %856 = vmatpush1.msra.mxu0 0.0
        %857 = vmatprep.subr.mxu0 0.0
        %858 = vmatpush1.msra.mxu0 0.0
        %859 = vmatprep.subr.mxu0 0.0
        %860 = vmatpush1.msra.mxu0 0.0
        %861 = vmatprep.subr.mxu0 0.0
        %862 = vmatpush1.msra.mxu0 0.0
        %863 = vmatprep.subr.mxu0 0.0
        %864 = vmatpush1.msra.mxu0 0.0
        %865 = vmatprep.subr.mxu0 0.0
        %866 = vmatpush1.msra.mxu0 0.0
        %867 = vmatprep.subr.mxu0 0.0
        %868 = vmatpush1.msra.mxu0 0.0
        %869 = vmatprep.subr.mxu0 0.0
        %870 = vmatpush1.msra.mxu0 0.0
        %871 = vmatprep.mubr.f32.mxu0 0.0
        %872 = vmatmul.mubr.f32.gmra.mrb[0].mxu0 %v805
        %v873 = vpop.f32.mrb[0].mxu0
        %v874 = vadd.f32 0.0, %v873
        %v875 = vpop.f32.mrb[0].mxu0
        %876 = vdwg.mxu0
        %s877 = sld [smem:[#allocation3 + $0x3]]
        %s878 = sld [smem:[#allocation3 + $0x83]]
        %s879 = sld [smem:[#allocation3 + $0x103]]
        %880 = vrot.lane.b32.xlu0 %v344, 104
        %v881 = vpop.permute.xlu0 %880
        %882 = vrot.lane.b32.xlu0 %v345, 72
        %v883 = vpop.permute.xlu0 %882
        %v884 = vsel %vm349, %v881, 0
        %v886 = vsel %vm349, %v883, 0
        %888 = vmatprep.subr.mxu0 0.0
        %889 = vmatpush1.xpose.msra.mxu0 %v886
        %890 = vmatprep.subr.mxu0 0.0
        %891 = vmatpush1.xpose.msra.mxu0 0.0
        %892 = vmatprep.subr.mxu0 0.0
        %893 = vmatpush1.xpose.msra.mxu0 0.0
        %894 = vmatprep.subr.mxu0 0.0
        %895 = vmatpush1.xpose.msra.mxu0 0.0
        %896 = vmatprep.subr.mxu0 0.0
        %897 = vmatpush1.xpose.msra.mxu0 0.0
        %898 = vmatprep.subr.mxu0 0.0
        %899 = vmatpush1.xpose.msra.mxu0 0.0
        %900 = vmatprep.subr.mxu0 0.0
        %901 = vmatpush1.xpose.msra.mxu0 0.0
        %902 = vmatprep.subr.mxu0 0.0
        %903 = vmatpush1.xpose.msra.mxu0 0.0
        %904 = vmatprep.subr.mxu0 0.0
        %905 = vmatpush1.xpose.msra.mxu0 0.0
        %906 = vmatprep.subr.mxu0 0.0
        %907 = vmatpush1.xpose.msra.mxu0 0.0
        %908 = vmatprep.subr.mxu0 0.0
        %909 = vmatpush1.xpose.msra.mxu0 0.0
        %910 = vmatprep.subr.mxu0 0.0
        %911 = vmatpush1.xpose.msra.mxu0 0.0
        %912 = vmatprep.subr.mxu0 0.0
        %913 = vmatpush1.xpose.msra.mxu0 0.0
        %914 = vmatprep.subr.mxu0 0.0
        %915 = vmatpush1.xpose.msra.mxu0 0.0
        %916 = vmatprep.subr.mxu0 0.0
        %917 = vmatpush1.xpose.msra.mxu0 0.0
        %918 = vmatprep.subr.mxu0 0.0
        %919 = vmatpush1.xpose.msra.mxu0 0.0
        %920 = vmatprep.subr.mxu0 0.0
        %921 = vmatpush1.xpose.msra.mxu0 0.0
        %922 = vmatprep.subr.mxu0 0.0
        %923 = vmatpush1.xpose.msra.mxu0 0.0
        %924 = vmatprep.subr.mxu0 0.0
        %925 = vmatpush1.xpose.msra.mxu0 0.0
        %926 = vmatprep.subr.mxu0 0.0
        %927 = vmatpush1.xpose.msra.mxu0 0.0
        %928 = vmatprep.subr.mxu0 0.0
        %929 = vmatpush1.xpose.msra.mxu0 0.0
        %930 = vmatprep.subr.mxu0 0.0
        %931 = vmatpush1.xpose.msra.mxu0 0.0
        %932 = vmatprep.subr.mxu0 0.0
        %933 = vmatpush1.xpose.msra.mxu0 0.0
        %934 = vmatprep.subr.mxu0 0.0
        %935 = vmatpush1.xpose.msra.mxu0 0.0
        %936 = vmatprep.subr.mxu0 0.0
        %937 = vmatpush1.xpose.msra.mxu0 0.0
        %938 = vmatprep.subr.mxu0 0.0
        %939 = vmatpush1.xpose.msra.mxu0 0.0
        %940 = vmatprep.subr.mxu0 0.0
        %941 = vmatpush1.xpose.msra.mxu0 0.0
        %942 = vmatprep.subr.mxu0 0.0
        %943 = vmatpush1.xpose.msra.mxu0 0.0
        %944 = vmatprep.subr.mxu0 0.0
        %945 = vmatpush1.xpose.msra.mxu0 0.0
        %946 = vmatprep.subr.mxu0 0.0
        %947 = vmatpush1.xpose.msra.mxu0 0.0
        %948 = vmatprep.subr.mxu0 0.0
        %949 = vmatpush1.xpose.msra.mxu0 0.0
        %950 = vmatprep.subr.mxu0 0.0
        %951 = vmatpush1.xpose.msra.mxu0 0.0
        %952 = vmatprep.mubr.f32.mxu0 0.0
        %953 = vmatmul.mubr.f32.gmra.mrb[0].mxu0 %v884
        %v954 = vpop.f32.mrb[0].mxu0
        %v955 = vadd.f32 0.0, %v954
        %v956 = vpop.f32.mrb[0].mxu0
        %957 = vdwg.mxu0
        %v958 = vsel %vm335, %v955, -3.4028235e+38
        %v959 = vsel %vm349, %v958, -inf
        %960 = vmax.xlane.f32.xlu0 %v959
        %v961 = vpop.xlane.xlu0 %960
        %v962 = vsub.f32 %v958, %v961
        %v963 = vmul.f32 %v962, 1.442695
        %v964 = vpow.pop %v963
        %v965 = vsel %vm349, %v964, 0.0
        %966 = vadd.xlane.f32.xlu0 %v965
        %v967 = vpop.xlane.xlu0 %966
        %v968 = vrcp.pop %v967
        %v969 = vmul.f32 %v964, %v968
        %v970 = vstv %s877
        %v971 = vmul.f32 %v970, %v969
        %v972 = vstv %s879
        %v973 = vmul.f32 %v972, %v339
        %v974 = vsub.f32 %v971, %v973
        %v975 = vsel %vm335, %v974, 0.0
        %v976 = vstv %s878
        %v977 = vsel %vm336, %v976, 0.0
        %v978 = vadd.f32 %v975, %v977
        %979 = vrot.lane.b32.xlu0 %v446, 104
        %v980 = vpop.permute.xlu0 %979
        %v983 = vsel %vm349, %v978, 0
        %985 = vmatprep.subr.mxu0 0.0
        %986 = vmatpush1.msra.mxu0 %v980
        %987 = vmatprep.subr.mxu0 0.0
        %988 = vmatpush1.msra.mxu0 0.0
        %989 = vmatprep.subr.mxu0 0.0
        %990 = vmatpush1.msra.mxu0 0.0
        %991 = vmatprep.subr.mxu0 0.0
        %992 = vmatpush1.msra.mxu0 0.0
        %993 = vmatprep.subr.mxu0 0.0
        %994 = vmatpush1.msra.mxu0 0.0
        %995 = vmatprep.subr.mxu0 0.0
        %996 = vmatpush1.msra.mxu0 0.0
        %997 = vmatprep.subr.mxu0 0.0
        %998 = vmatpush1.msra.mxu0 0.0
        %999 = vmatprep.subr.mxu0 0.0
        %1000 = vmatpush1.msra.mxu0 0.0
        %1001 = vmatprep.subr.mxu0 0.0
        %1002 = vmatpush1.msra.mxu0 0.0
        %1003 = vmatprep.subr.mxu0 0.0
        %1004 = vmatpush1.msra.mxu0 0.0
        %1005 = vmatprep.subr.mxu0 0.0
        %1006 = vmatpush1.msra.mxu0 0.0
        %1007 = vmatprep.subr.mxu0 0.0
        %1008 = vmatpush1.msra.mxu0 0.0
        %1009 = vmatprep.subr.mxu0 0.0
        %1010 = vmatpush1.msra.mxu0 0.0
        %1011 = vmatprep.subr.mxu0 0.0
        %1012 = vmatpush1.msra.mxu0 0.0
        %1013 = vmatprep.subr.mxu0 0.0
        %1014 = vmatpush1.msra.mxu0 0.0
        %1015 = vmatprep.subr.mxu0 0.0
        %1016 = vmatpush1.msra.mxu0 0.0
        %1017 = vmatprep.subr.mxu0 0.0
        %1018 = vmatpush1.msra.mxu0 0.0
        %1019 = vmatprep.subr.mxu0 0.0
        %1020 = vmatpush1.msra.mxu0 0.0
        %1021 = vmatprep.subr.mxu0 0.0
        %1022 = vmatpush1.msra.mxu0 0.0
        %1023 = vmatprep.subr.mxu0 0.0
        %1024 = vmatpush1.msra.mxu0 0.0
        %1025 = vmatprep.subr.mxu0 0.0
        %1026 = vmatpush1.msra.mxu0 0.0
        %1027 = vmatprep.subr.mxu0 0.0
        %1028 = vmatpush1.msra.mxu0 0.0
        %1029 = vmatprep.subr.mxu0 0.0
        %1030 = vmatpush1.msra.mxu0 0.0
        %1031 = vmatprep.subr.mxu0 0.0
        %1032 = vmatpush1.msra.mxu0 0.0
        %1033 = vmatprep.subr.mxu0 0.0
        %1034 = vmatpush1.msra.mxu0 0.0
        %1035 = vmatprep.subr.mxu0 0.0
        %1036 = vmatpush1.msra.mxu0 0.0
        %1037 = vmatprep.subr.mxu0 0.0
        %1038 = vmatpush1.msra.mxu0 0.0
        %1039 = vmatprep.subr.mxu0 0.0
        %1040 = vmatpush1.msra.mxu0 0.0
        %1041 = vmatprep.subr.mxu0 0.0
        %1042 = vmatpush1.msra.mxu0 0.0
        %1043 = vmatprep.subr.mxu0 0.0
        %1044 = vmatpush1.msra.mxu0 0.0
        %1045 = vmatprep.subr.mxu0 0.0
        %1046 = vmatpush1.msra.mxu0 0.0
        %1047 = vmatprep.subr.mxu0 0.0
        %1048 = vmatpush1.msra.mxu0 0.0
        %1049 = vmatprep.mubr.f32.mxu0 0.0
        %1050 = vmatmul.mubr.f32.gmra.mrb[0].mxu0 %v983
        %v1051 = vpop.f32.mrb[0].mxu0
        %v1052 = vadd.f32 0.0, %v1051
        %v1053 = vpop.f32.mrb[0].mxu0
        %1054 = vdwg.mxu0
        %1056 = vrot.lane.b32.xlu0 %v696, 8
        %v1057 = vpop.permute.xlu0 %1056
        %1060 = vrot.lane.b32.xlu0 %v874, 16
        %v1061 = vpop.permute.xlu0 %1060
        %1064 = vrot.lane.b32.xlu0 %v1052, 24
        %v1065 = vpop.permute.xlu0 %1064
        %v1067 = vsel %vm349, %v517, %v1057
        %vm1068 = vcmask 130048
        %v1069 = vsel %vm1068, %v1067, %v1061
        %vm1070 = vcmask 195584
        %v1071 = vsel %vm1070, %v1069, %v1065
        %vm1072 = vcmask 261120
        %1073 = vst.msk [vmem:[%s231] sm:$0xff] %vm1072, %v1071
        %s1074 = sand.u32 %s131, 1
        %s1075 = scalar_lea.sflag [#allocation5], %s1074
        %s1076 = sand.u32 %s131, 1
        %s1077 = smul.addr %s1076, 8
        %s1078 = scalar_lea.vmem [#allocation8], %s1077
        // Predicated region
        $region49: #{simplified_attention.1} parent=35 // pred_check
          %p1079 = pneg %p141
        $region50: #{simplified_attention.1} parent=35 // pred_check_branch
          %1081 = sbr.rel (%p1079) target = $region52
        $region51: #{simplified_attention.1} parent=35 // pred_region
          %s1083 = ssub.s32 128, 128
          %1084 = vsyncadd %s1075, %s1083
          %s1085 = sadd.s32 %s25, %s24
          %s1086 = smul.addr %s1085, 128
          %s1087 = scalar_lea.hbm %s4, %s1086
          %s1089 = sshll.u32 %s1078, 4
          %s1090 = int_to_ptr.vmem [resolvable:$true] %s1089
          %1092 = dma.vmem_to_hbm [thread:$0]  %s1090, 128, %s1087, %s1075
        $region52: #{simplified_attention.1} parent=35 // pred_fallthru
          _
      $region36: #{simplified_attention.1} parent=5 // pred_fallthru
        _
      %p1093 = scmp.le.s32.totalorder 2, %s15
      // Predicated region
      $region53: #{simplified_attention.1} parent=5 // pred_check
        %p1094 = pneg %p1093
      $region54: #{simplified_attention.1} parent=5 // pred_check_branch
        %1096 = sbr.rel (%p1094) target = $region56
      $region55: #{simplified_attention.1} parent=5 // pred_region
        %s1097 = ssub.s32 %s15, 2
        // Predicated region
        $region57: #{simplified_attention.1} parent=55 // pred_check
          %p1098 = pneg %p147
        $region58: #{simplified_attention.1} parent=55 // pred_check_branch
          %1100 = sbr.rel (%p1098) target = $region60
        $region59: #{simplified_attention.1} parent=55 // pred_region
          %s1101 = sand.u32 %s132, 1
          %s1102 = scalar_lea.sflag [#allocation5], %s1101
          %s1103 = sand.u32 %s132, 1
          %s1104 = smul.addr %s1103, 8
          %s1105 = scalar_lea.vmem [#allocation8], %s1104
          %1106 = dma.done %s1102, 128
        $region60: #{simplified_attention.1} parent=55 // pred_fallthru
          _
      $region56: #{simplified_attention.1} parent=5 // pred_fallthru
        _
    $region6: #{simplified_attention.1} parent=1 // loop_footer
      %s19 = sadd.s32 1, %s15
    $region7: #{simplified_attention.1} parent=1 // loop_footer_branch
      %14 = sbr.rel target = $region3
    $region8: #{simplified_attention.1} parent=1 // loop_exit
      _
    %1107 = vsyncpa [#allocation4], 1
    %s1108 = scalar_lea.sflag [#allocation4], 1
    %1109 = vsyncpa %s1108, 1
    %1110 = vsyncpa [#allocation5], 1
    %s1111 = scalar_lea.sflag [#allocation5], 1
    %1112 = vsyncpa %s1111, 1
    %1113 = vsyncpa [#allocation6], 1
    %s1114 = scalar_lea.sflag [#allocation6], 1
    %1115 = vsyncpa %s1114, 1

</llo_original>
